<compile_context>
chip_gen: v5e
topology: v5e:2x2
jax: 0.10.0
libtpu: 0.0.40
codegen_flags: <defaults>
</compile_context>

<pallas_src>
import math
from functools import partial

import jax
import jax.numpy as jnp
from jax.experimental import pallas as pl
from jax.experimental.pallas import tpu as pltpu


def _attn_kernel(qkv_ref, o_ref, *, scale, tq, matmul_bf16):
    """One grid step: attention for a (Bblk, 3, C, T) tile of (batch*head) rows."""
    length = qkv_ref.shape[-1]
    n_chunks = length // tq

    in_dtype = qkv_ref.dtype
    mm_dtype = jnp.bfloat16 if (matmul_bf16 and in_dtype == jnp.float32) else in_dtype

    # Leading-axis q/k/v split (size-3 axis): layout-safe, never slices sublanes/lanes.
    k = qkv_ref[:, 1].astype(mm_dtype)                           # (Bblk, C, T)
    v = qkv_ref[:, 2].astype(mm_dtype)                           # (Bblk, C, T)

    def one_chunk(q_blk):
        # q_blk: (Bblk, C, Tq).  Two-sided 1/sqrt(sqrt(ch)) folded into one q multiply.
        qs = (q_blk * jnp.asarray(scale, q_blk.dtype)).astype(mm_dtype)
        # Scores w[b,t,s] = sum_c q[b,c,t] k[b,c,s]; f32 accumulation on the MXU.
        w = jnp.einsum('bct,bcs->bts', qs, k,
                       preferred_element_type=jnp.float32)       # (Bblk, Tq, T)
        # Numerically stable softmax stats in f32 over the key axis.
        w_max = jnp.max(w, axis=-1, keepdims=True)
        w_exp = jnp.exp(w - w_max)                               # f32, values <= 1
        w_sum = jnp.sum(w_exp, axis=-1, keepdims=True)           # (Bblk, Tq, 1)
        # Deferred normalization: PV on unnormalized probs, scale the small result.
        p = w_exp.astype(mm_dtype)                               # (Bblk, Tq, T)
        a_t = jnp.einsum('bts,bcs->btc', p, v,
                         preferred_element_type=jnp.float32)     # (Bblk, Tq, C)
        a_t = a_t * pl.reciprocal(w_sum, approx=False)
        # Cheap (Tq, C) -> (C, Tq) XLU swap keeps the module's channel-major layout.
        return jnp.swapaxes(a_t, 1, 2).astype(o_ref.dtype)       # (Bblk, C, Tq)

    if n_chunks == 1:
        o_ref[...] = one_chunk(qkv_ref[:, 0])
    else:
        # Query-chunked path: caps VMEM at Bblk*Tq*T while K/V stay fully resident.
        def body(i, carry):
            q0 = pl.multiple_of(i * tq, tq)
            o_ref[:, :, pl.ds(q0, tq)] = one_chunk(qkv_ref[:, 0, :, pl.ds(q0, tq)])
            return carry
        jax.lax.fori_loop(0, n_chunks, body, 0)


def _tpu_vmem_capacity_bytes():
    """Per-TensorCore VMEM capacity, with a conservative (v7x) fallback."""
    try:
        info = pltpu.get_tpu_info()
        cap = int(getattr(info, "vmem_capacity_bytes", 0))
        if cap > 0:
            return cap
    except Exception:
        pass
    return 64 * 1024 * 1024


def _choose_tiling(bh, ch, length, itemsize, budget, prefer_even_steps):
    """Pick (Bblk, Tq): largest (batch*head) block + query chunk fitting `budget`."""

    def footprint(b, tq):
        io = 2 * b * (3 * ch + ch) * length * itemsize            # 2x-buffered in + out tiles
        scores = b * tq * length * (4 + 4 + itemsize)              # w, w_exp (f32) + p (in-dtype)
        results = b * ch * tq * (4 + 4 + itemsize)                 # a_t, transposed copy, store cast
        return io + scores + results

    # Prefer no query chunking; otherwise lane-aligned 128-multiple divisors of T.
    tq_cands = [length] + [t for t in (512, 256, 128) if t < length and length % t == 0]
    divisors = [d for d in range(1, bh + 1) if bh % d == 0]

    for tq in tq_cands:
        fitting = [d for d in divisors if footprint(d, tq) <= budget]
        if not fitting:
            continue
        best = max(fitting)
        if prefer_even_steps:
            # v7x shards the parallel grid axis across 2 TensorCores: keep step count even.
            even = [d for d in fitting if (bh // d) % 2 == 0]
            if even:
                best = max(even)
        return best, tq

    raise ValueError(
        "QKV attention tile does not fit in VMEM even at Bblk=1, Tq=128 "
        f"(bh={bh}, ch={ch}, T={length}); a key-axis flash tiling is required.")


def qkv_attention(qkv, num_heads, *, matmul_bf16=False):
    """Pallas equivalent of QKVAttention.forward.

    Args:
      qkv: [B, H*C*3, T] array (f32 or bf16; do not use fp16 — scale folding assumes
           no overflow risk).
      num_heads: H.
      matmul_bf16: cast f32 matmul operands to bf16 (v5e MXU peak); softmax stays f32.

    Returns:
      [B, H*C, T] array.
    """
    bs, width, length = qkv.shape
    assert width % (3 * num_heads) == 0
    ch = width // (3 * num_heads)
    scale = 1.0 / math.sqrt(ch)        # == (1/sqrt(sqrt(ch)))**2, applied to q only

    bh = bs * num_heads
    qkv_r = qkv.reshape(bh, 3, ch, length)          # free reshape; q/k/v on a leading axis
    itemsize = jnp.dtype(qkv.dtype).itemsize

    vmem_cap = _tpu_vmem_capacity_bytes()
    vmem_limit = min(int(vmem_cap * 0.85), vmem_cap - 8 * 1024 * 1024, 112 * 1024 * 1024)
    vmem_limit = max(vmem_limit, 32 * 1024 * 1024)
    budget = int(vmem_limit * 0.75)                  # chooser budget tied to the limit
    prefer_even_steps = vmem_cap <= 64 * 1024 * 1024  # v7x heuristic (2 TCs per chip)

    bblk, tq = _choose_tiling(bh, ch, length, itemsize, budget, prefer_even_steps)

    cost = pl.CostEstimate(
        flops=4 * bh * length * length * ch,              # QK^T + PV, 2 flops/MAC
        transcendentals=bh * length * length,             # exp in softmax
        bytes_accessed=4 * bh * ch * length * itemsize,   # 3*C*T in + C*T out
    )

    out = pl.pallas_call(
        partial(_attn_kernel, scale=scale, tq=tq, matmul_bf16=matmul_bf16),
        out_shape=jax.ShapeDtypeStruct((bh, ch, length), qkv.dtype),
        grid_spec=pltpu.PrefetchScalarGridSpec(
            num_scalar_prefetch=0,
            grid=(bh // bblk,),
            in_specs=[pl.BlockSpec((bblk, 3, ch, length), lambda b: (b, 0, 0, 0))],
            out_specs=pl.BlockSpec((bblk, ch, length), lambda b: (b, 0, 0)),
        ),
        compiler_params=pltpu.CompilerParams(
            dimension_semantics=("parallel",),
            vmem_limit_bytes=int(vmem_limit),
        ),
        cost_estimate=cost,
    )(qkv_r)

    return out.reshape(bs, num_heads * ch, length)


def _reference(qkv, num_heads):
    bs, width, length = qkv.shape
    ch = width // (3 * num_heads)
    qkv_r = qkv.reshape(bs * num_heads, 3 * ch, length)
    q, k, v = qkv_r[:, :ch], qkv_r[:, ch:2 * ch], qkv_r[:, 2 * ch:]
    scale = 1.0 / math.sqrt(math.sqrt(ch))
    w = jnp.einsum('bct,bcs->bts', q * scale, k * scale)
    w = jax.nn.softmax(w.astype(jnp.float32), axis=-1).astype(w.dtype)
    a = jnp.einsum('bts,bcs->bct', w, v)
    return a.reshape(bs, -1, length)


if __name__ == "__main__":
    B, H, C, T = 2, 4, 8, 16                 # width = H*C*3 = 96
    key = jax.random.PRNGKey(0)
    qkv = jax.random.normal(key, (B, H * C * 3, T), dtype=jnp.float32)

    out = qkv_attention(qkv, num_heads=H)
    jax.block_until_ready(out)

    ref = _reference(qkv, H)
    assert out.shape == (B, H * C, T), out.shape
    assert jnp.allclose(out, ref, atol=1e-4, rtol=1e-4), "mismatch vs reference"

    print("KERNEL_OK")
</pallas_src>

<mosaic_0001>
module attributes {stable_mosaic.version = 11 : i64} {
  func.func @_attn_kernel(%arg0: i32, %arg1: memref<4x3x8x16xf32, #tpu.memory_space<vmem>>, %arg2: memref<4x8x16xf32, #tpu.memory_space<vmem>>) attributes {dimension_semantics = [#tpu.dimension_semantics<parallel>], iteration_bounds = array<i64: 2>, scalar_prefetch = 0 : i64, scratch_operands = 0 : i64, tpu.core_type = #tpu.core_type<tc>, window_params = [{transform_indices = @transform_0, window_bounds = array<i64: 4, 3, 8, 16>}, {transform_indices = @transform_1, window_bounds = array<i64: 4, 8, 16>}]} {
    %c0 = arith.constant 0 : index
    %c1 = arith.constant 1 : index
    %c0_0 = arith.constant 0 : index
    %c0_1 = arith.constant 0 : index
    %0 = vector.load %arg1[%c0, %c1, %c0_0, %c0_1] : memref<4x3x8x16xf32, #tpu.memory_space<vmem>>, vector<4x1x8x16xf32>
    %1 = vector.shape_cast %0 : vector<4x1x8x16xf32> to vector<4x8x16xf32>
    %c0_2 = arith.constant 0 : index
    %c2 = arith.constant 2 : index
    %c0_3 = arith.constant 0 : index
    %c0_4 = arith.constant 0 : index
    %2 = vector.load %arg1[%c0_2, %c2, %c0_3, %c0_4] : memref<4x3x8x16xf32, #tpu.memory_space<vmem>>, vector<4x1x8x16xf32>
    %3 = vector.shape_cast %2 : vector<4x1x8x16xf32> to vector<4x8x16xf32>
    %c0_5 = arith.constant 0 : index
    %c0_6 = arith.constant 0 : index
    %c0_7 = arith.constant 0 : index
    %c0_8 = arith.constant 0 : index
    %4 = vector.load %arg1[%c0_5, %c0_6, %c0_7, %c0_8] : memref<4x3x8x16xf32, #tpu.memory_space<vmem>>, vector<4x1x8x16xf32>
    %5 = vector.shape_cast %4 : vector<4x1x8x16xf32> to vector<4x8x16xf32>
    %cst = arith.constant 0.353553385 : f32
    %6 = vector.broadcast %cst : f32 to vector<4x8x16xf32>
    %7 = arith.mulf %5, %6 : vector<4x8x16xf32>
    "tpu.trace_start"() <{level = 10 : i32, message = "bct,bcs->bts"}> : () -> ()
    %cst_9 = arith.constant dense<0.000000e+00> : vector<4x16x16xf32>
    %8 = tpu.matmul %7, %1, %cst_9 {dimension_numbers = #tpu.dot_dimension_numbers<[1], [1], [2], [2], [0, 0, 0, 2, 1, 2], [0], [0]>} : vector<4x8x16xf32>, vector<4x8x16xf32>, vector<4x16x16xf32> -> vector<4x16x16xf32>
    "tpu.trace_stop"() : () -> ()
    %cst_10 = arith.constant dense<0xFF800000> : vector<4x16xf32>
    %9 = vector.multi_reduction <maximumf>, %8, %cst_10 [2] : vector<4x16x16xf32> to vector<4x16xf32>
    %10 = vector.shape_cast %9 : vector<4x16xf32> to vector<4x16x1xf32>
    %11 = vector.broadcast %10 : vector<4x16x1xf32> to vector<4x16x16xf32>
    %12 = arith.subf %8, %11 : vector<4x16x16xf32>
    %13 = math.exp %12 : vector<4x16x16xf32>
    %cst_11 = arith.constant dense<0.000000e+00> : vector<4x16xf32>
    %14 = vector.multi_reduction <add>, %13, %cst_11 [2] : vector<4x16x16xf32> to vector<4x16xf32>
    %15 = vector.shape_cast %14 : vector<4x16xf32> to vector<4x16x1xf32>
    "tpu.trace_start"() <{level = 10 : i32, message = "bts,bcs->btc"}> : () -> ()
    %cst_12 = arith.constant dense<0.000000e+00> : vector<4x16x8xf32>
    %16 = tpu.matmul %13, %3, %cst_12 {dimension_numbers = #tpu.dot_dimension_numbers<[2], [2], [1], [1], [0, 0, 0, 1, 1, 1], [0], [0]>} : vector<4x16x16xf32>, vector<4x8x16xf32>, vector<4x16x8xf32> -> vector<4x16x8xf32>
    "tpu.trace_stop"() : () -> ()
    %17 = tpu.reciprocal %15 : vector<4x16x1xf32> -> vector<4x16x1xf32>
    %18 = vector.broadcast %17 : vector<4x16x1xf32> to vector<4x16x8xf32>
    %19 = arith.mulf %16, %18 : vector<4x16x8xf32>
    %20 = tpu.transpose %19, [0, 2, 1] : vector<4x16x8xf32> -> vector<4x8x16xf32>
    %c0_13 = arith.constant 0 : index
    %c0_14 = arith.constant 0 : index
    %c0_15 = arith.constant 0 : index
    %21 = vector.load %arg2[%c0_13, %c0_14, %c0_15] : memref<4x8x16xf32, #tpu.memory_space<vmem>>, vector<4x8x16xf32>
    tpu.vector_store %arg2[%c0_13, %c0_14, %c0_15], %20 {strides = array<i32>} : memref<4x8x16xf32, #tpu.memory_space<vmem>>, vector<4x8x16xf32>,
    return
  }
  func.func @transform_0(%arg0: i32) -> (i32, i32, i32, i32) {
    %c0_i32 = arith.constant 0 : i32
    %c0_i32_0 = arith.constant 0 : i32
    %c0_i32_1 = arith.constant 0 : i32
    %c0_i32_2 = arith.constant 0 : i32
    return %arg0, %c0_i32, %c0_i32_0, %c0_i32_1 : i32, i32, i32, i32
  }
  func.func @transform_1(%arg0: i32) -> (i32, i32, i32) {
    %c0_i32 = arith.constant 0 : i32
    %c0_i32_0 = arith.constant 0 : i32
    %c0_i32_1 = arith.constant 0 : i32
    return %arg0, %c0_i32, %c0_i32_0 : i32, i32, i32
  }
}

</mosaic_0001>

<llo_original>
// kernel: tpu_custom_call.1
$region0: #{tpu_custom_call.1}
  #allocation0 [shape = 'u32[]', space=smem, size = 0x4, offset = 0x4, fixed_abs, tag = 'smem constant byte address 0x4 - core index']
  #allocation1 [shape = 'u32[72,128]{1,0:T(1,128)}', space=vmem, size = 0x9000, scoped, tag = 'internal scratch']
  %s0 = inlined_call_operand.hbm [shape: f32[8,3,8,16], index: 0, kind: input, shape index: {}]
  %s1 = inlined_call_operand.hbm [shape: f32[8,8,16], index: 1, kind: output, shape index: {}]
  %s2 = sld [smem:[#allocation0]]
  $region41: #{tpu_custom_call.1} parent=0
    _
  %s4 = ssub.s32 1, %s2
  %s5 = scalar_select 0, %s4, %s2
  $region1: #{tpu_custom_call.1} parent=0
    #allocation2 [shape = 'u8[98304]{0}', space=vmem, size = 0x18000, scoped, tag = 'input window, operand 0']
    #allocation3 [shape = 's32[2]{0}', space=sflag, size = 0x8, scoped, tag = 'scoped memory for tpu_custom_call.1']
    #allocation4 [shape = 's32[2]{0}', space=sflag, size = 0x8, scoped, tag = 'scoped memory for tpu_custom_call.1']
    #allocation5 [shape = 'u8[32768]{0}', space=vmem, size = 0x8000, scoped, tag = 'output window, operand 0']
    %6 = vsyncpa [#allocation3], 0
    %s7 = scalar_lea.sflag [#allocation3], 1
    %8 = vsyncpa %s7, 0
    %9 = vsyncpa [#allocation4], 0
    %s10 = scalar_lea.sflag [#allocation4], 1
    %11 = vsyncpa %s10, 0
    loop: start=0, step=1, limit=4
    $region2: #{tpu_custom_call.1} parent=1 // loop_pre_header
      _
    $region3: #{tpu_custom_call.1} parent=1 // loop_header
      %s13 = sphi 0, %s17
      %p14 = scmp.ge.s32.totalorder %s13, 4
      %s23 = sphi 0, %s25
      %s26 = sphi 0, %s23
      %s27 = sphi 0, %s26
      %s43 = sphi 0, %s27
      %s49 = sphi 0, %s51
      %s52 = sphi 0, %s49
      %s53 = sphi 0, %s52
      %s69 = sphi 0, %s53
    $region4: #{tpu_custom_call.1} parent=1 // loop_header_branch
      %16 = sbr.rel (%p14) target = $region8
    $region5: #{tpu_custom_call.1} parent=1 // loop_body
      %s18 = ssub.s32 %s13, 1
      %s19 = ssub.s32 %s13, 2
      %s20 = sadd.s32 %s13, 1
      %s21 = ssub.s32 %s13, %s20
      %p22 = scmp.eq.s32.totalorder %s21, 0
      %s24 = sadd.s32 %s23, 1
      %s25 = scalar_select %p22, %s23, %s24
      %p28 = pneg %p22
      %p29 = scmp.eq.s32.totalorder %s13, 1
      %p30 = por %p28, %p29
      %p31 = scmp.ne.s32.totalorder %s23, %s26
      %p32 = scmp.eq.s32.totalorder %s13, 0
      %p33 = por %p31, %p32
      %p34 = scmp.ne.s32.totalorder %s23, %s26
      %p35 = scmp.eq.s32.totalorder %s18, 1
      %p36 = por %p34, %p35
      %p37 = scmp.ne.s32.totalorder %s26, %s27
      %p38 = scmp.eq.s32.totalorder %s18, 0
      %p39 = por %p37, %p38
      %p40 = scmp.ne.s32.totalorder %s26, %s27
      %p41 = scmp.eq.s32.totalorder %s19, 1
      %p42 = por %p40, %p41
      %p44 = scmp.ne.s32.totalorder %s27, %s43
      %p45 = scmp.eq.s32.totalorder %s19, 0
      %p46 = por %p44, %p45
      %s47 = ssub.s32 %s13, %s20
      %p48 = scmp.eq.s32.totalorder %s47, 0
      %s50 = sadd.s32 %s49, 1
      %s51 = scalar_select %p48, %s49, %s50
      %p54 = pneg %p48
      %p55 = scmp.eq.s32.totalorder %s13, 1
      %p56 = por %p54, %p55
      %p57 = scmp.ne.s32.totalorder %s49, %s52
      %p58 = scmp.eq.s32.totalorder %s13, 0
      %p59 = por %p57, %p58
      %p60 = scmp.ne.s32.totalorder %s49, %s52
      %p61 = scmp.eq.s32.totalorder %s18, 1
      %p62 = por %p60, %p61
      %p63 = scmp.ne.s32.totalorder %s52, %s53
      %p64 = scmp.eq.s32.totalorder %s18, 0
      %p65 = por %p63, %p64
      %p66 = scmp.ne.s32.totalorder %s52, %s53
      %p67 = scmp.eq.s32.totalorder %s19, 1
      %p68 = por %p66, %p67
      %p70 = scmp.ne.s32.totalorder %s53, %s69
      %p71 = scmp.eq.s32.totalorder %s19, 0
      %p72 = por %p70, %p71
      %p73 = scmp.le.s32.totalorder 1, %s13
      %p74 = scmp.lt.s32.totalorder %s13, 3
      %p75 = pnand %p73, %p74
      %p76 = pneg %p75
      // Predicated region
      $region9: #{tpu_custom_call.1} parent=5 // pred_check
        _
      $region10: #{tpu_custom_call.1} parent=5 // pred_check_branch
        %78 = sbr.rel (%p75) target = $region12
      $region11: #{tpu_custom_call.1} parent=5 // pred_region
        %s79 = ssub.s32 %s13, 1
      $region12: #{tpu_custom_call.1} parent=5 // pred_fallthru
        _
      %p80 = scmp.lt.s32.totalorder %s13, 2
      // Predicated region
      $region13: #{tpu_custom_call.1} parent=5 // pred_check
        %p81 = pneg %p80
      $region14: #{tpu_custom_call.1} parent=5 // pred_check_branch
        %83 = sbr.rel (%p81) target = $region16
      $region15: #{tpu_custom_call.1} parent=5 // pred_region
        // Predicated region
        $region17: #{tpu_custom_call.1} parent=15 // pred_check
          %p84 = pneg %p33
        $region18: #{tpu_custom_call.1} parent=15 // pred_check_branch
          %86 = sbr.rel (%p84) target = $region20
        $region19: #{tpu_custom_call.1} parent=15 // pred_region
          %s87 = sand.u32 %s23, 1
          %s88 = scalar_lea.sflag [#allocation3], %s87
          %s89 = sand.u32 %s23, 1
          %s90 = smul.addr %s89, 96
          %s91 = scalar_lea.vmem [#allocation2], %s90
          %s92 = smul.u32 4, %s13
          %94 = vsyncadd %s88, 0
          %s95 = smul.addr %s92, 3
          %s96 = smul.addr %s95, 8
          %s97 = scalar_lea.hbm %s0, %s96
          %s98 = sshll.u32 %s97, 4
          %s99 = int_to_ptr.hbm [resolvable:$true] %s98
          %s100 = sshll.u32 %s91, 4
          %s101 = int_to_ptr.vmem [resolvable:$true] %s100
          %106 = dma.hbm_to_vmem [thread:$0]  %s99, 1536, %s101, %s88, 128, 128, 8
        $region20: #{tpu_custom_call.1} parent=15 // pred_fallthru
          _
      $region16: #{tpu_custom_call.1} parent=5 // pred_fallthru
        _
      %p107 = scmp.le.s32.totalorder 1, %s13
      %p108 = scmp.lt.s32.totalorder %s13, 3
      %p109 = pnand %p107, %p108
      %p110 = pneg %p109
      // Predicated region
      $region21: #{tpu_custom_call.1} parent=5 // pred_check
        _
      $region22: #{tpu_custom_call.1} parent=5 // pred_check_branch
        %112 = sbr.rel (%p109) target = $region24
      $region23: #{tpu_custom_call.1} parent=5 // pred_region
        %s113 = ssub.s32 %s13, 1
        %s114 = sand.u32 %s26, 1
        %s115 = scalar_lea.sflag [#allocation3], %s114
        %s116 = sand.u32 %s26, 1
        %s117 = smul.addr %s116, 96
        %s118 = scalar_lea.vmem [#allocation2], %s117
        // Predicated region
        $region25: #{tpu_custom_call.1} parent=23 // pred_check
          %p119 = pneg %p39
        $region26: #{tpu_custom_call.1} parent=23 // pred_check_branch
          %121 = sbr.rel (%p119) target = $region28
        $region27: #{tpu_custom_call.1} parent=23 // pred_region
          %123 = dma.done %s115, 1536
        $region28: #{tpu_custom_call.1} parent=23 // pred_fallthru
          _
        %s124 = sand.u32 %s26, 1
        %s125 = scalar_lea.sflag [#allocation3], %s124
        %s126 = sand.u32 %s26, 1
        %s127 = smul.addr %s126, 96
        %s128 = scalar_lea.vmem [#allocation2], %s127
        %p129 = pneg %p39
        %p130 = pneg %p36
        %p131 = pneg %p65
        %p132 = pneg %p62
        %s133 = sand.u32 %s52, 1
        %s134 = scalar_lea.sflag [#allocation4], %s133
        %s135 = sand.u32 %s52, 1
        %s136 = smul.addr %s135, 32
        %s137 = scalar_lea.vmem [#allocation5], %s136
        %s138 = smul.u32 4, %s18
        %s139 = smul.u32 4, %s18
        %s140 = scalar_lea.vmem %s118, 8 [#allocation2]
        %v141 = vld [vmem:[%s140] sm:$0xff]
        %v142 = vld [vmem:[%s140 + $0x18] sm:$0xff]
        %v143 = vld [vmem:[%s140 + $0x30] sm:$0xff]
        %v144 = vld [vmem:[%s140 + $0x48] sm:$0xff]
        %s145 = scalar_lea.vmem %s118, 16 [#allocation2]
        %v146 = vld [vmem:[%s145] sm:$0xff]
        %v147 = vld [vmem:[%s145 + $0x18] sm:$0xff]
        %v148 = vld [vmem:[%s145 + $0x30] sm:$0xff]
        %v149 = vld [vmem:[%s145 + $0x48] sm:$0xff]
        %v150 = vld [vmem:[%s118] sm:$0xff]
        %v151 = vld [vmem:[%s118 + $0x18] sm:$0xff]
        %v152 = vld [vmem:[%s118 + $0x30] sm:$0xff]
        %v153 = vld [vmem:[%s118 + $0x48] sm:$0xff]
        %v154 = vmul.f32 %v150, 0.35355338
        %v155 = vmul.f32 %v151, 0.35355338
        %v156 = vmul.f32 %v152, 0.35355338
        %v157 = vmul.f32 %v153, 0.35355338
        %158 = vxpose.xlu0.b32.start [1/16] %v154, 128
        %159 = vxpose.xlu0.b32.cont [2/16] 0.0, 128
        %160 = vxpose.xlu0.b32.cont [3/16] 0.0, 128
        %161 = vxpose.xlu0.b32.cont [4/16] 0.0, 128
        %162 = vxpose.xlu0.b32.cont [5/16] 0.0, 128
        %163 = vxpose.xlu0.b32.cont [6/16] 0.0, 128
        %164 = vxpose.xlu0.b32.cont [7/16] 0.0, 128
        %165 = vxpose.xlu0.b32.cont [8/16] 0.0, 128
        %166 = vxpose.xlu0.b32.cont [9/16] 0.0, 128
        %167 = vxpose.xlu0.b32.cont [10/16] 0.0, 128
        %168 = vxpose.xlu0.b32.cont [11/16] 0.0, 128
        %169 = vxpose.xlu0.b32.cont [12/16] 0.0, 128
        %170 = vxpose.xlu0.b32.cont [13/16] 0.0, 128
        %171 = vxpose.xlu0.b32.cont [14/16] 0.0, 128
        %172 = vxpose.xlu0.b32.cont [15/16] 0.0, 128
        %173 = vxpose.xlu0.b32.end [16/16] 0.0, 128
        %v174 = vpop.trf.xlu0
        %v175 = vpop.trf.xlu0
        %v176 = vpop.trf.xlu0
        %v177 = vpop.trf.xlu0
        %v178 = vpop.trf.xlu0
        %v179 = vpop.trf.xlu0
        %v180 = vpop.trf.xlu0
        %v181 = vpop.trf.xlu0
        %v182 = vpop.trf.xlu0
        %v183 = vpop.trf.xlu0
        %v184 = vpop.trf.xlu0
        %v185 = vpop.trf.xlu0
        %v186 = vpop.trf.xlu0
        %v187 = vpop.trf.xlu0
        %v188 = vpop.trf.xlu0
        %v189 = vpop.trf.xlu0
        %vm190 = vcmask 64512
        %v192 = vsel %vm190, %v174, 0
        %v195 = vsel %vm190, %v175, 0
        %197 = vmatpush.msra.mxu0 0.0
        %198 = vmatpush.msra.mxu0 0.0
        %199 = vmatpush.msra.mxu0 0.0
        %200 = vmatpush.msra.mxu0 0.0
        %201 = vmatpush.msra.mxu0 0.0
        %202 = vmatpush.msra.mxu0 0.0
        %203 = vmatpush.msra.mxu0 0.0
        %204 = vmatpush.msra.mxu0 0.0
        %205 = vmatpush.msra.mxu0 0.0
        %206 = vmatpush.msra.mxu0 0.0
        %207 = vmatpush.msra.mxu0 0.0
        %208 = vmatpush.msra.mxu0 0.0
        %209 = vmatpush.msra.mxu0 0.0
        %210 = vmatpush.msra.mxu0 0.0
        %211 = vmatpush.msra.mxu0 0.0
        %212 = vmatpush.msra.mxu0 %v141
        %213 = vmatmul.f32.gmra.mxu0 %v192
        %v214 = vpop.f32.mrf.mxu0
        %v215 = vadd.f32 0.0, %v214
        %216 = vmatmul.f32.gmra.mxu0 %v195
        %v217 = vpop.f32.mrf.mxu0
        %v218 = vadd.f32 0.0, %v217
        %219 = vdwg.mxu0
        %220 = vxpose.xlu0.b32.start [1/16] %v155, 128
        %221 = vxpose.xlu0.b32.cont [2/16] 0.0, 128
        %222 = vxpose.xlu0.b32.cont [3/16] 0.0, 128
        %223 = vxpose.xlu0.b32.cont [4/16] 0.0, 128
        %224 = vxpose.xlu0.b32.cont [5/16] 0.0, 128
        %225 = vxpose.xlu0.b32.cont [6/16] 0.0, 128
        %226 = vxpose.xlu0.b32.cont [7/16] 0.0, 128
        %227 = vxpose.xlu0.b32.cont [8/16] 0.0, 128
        %228 = vxpose.xlu0.b32.cont [9/16] 0.0, 128
        %229 = vxpose.xlu0.b32.cont [10/16] 0.0, 128
        %230 = vxpose.xlu0.b32.cont [11/16] 0.0, 128
        %231 = vxpose.xlu0.b32.cont [12/16] 0.0, 128
        %232 = vxpose.xlu0.b32.cont [13/16] 0.0, 128
        %233 = vxpose.xlu0.b32.cont [14/16] 0.0, 128
        %234 = vxpose.xlu0.b32.cont [15/16] 0.0, 128
        %235 = vxpose.xlu0.b32.end [16/16] 0.0, 128
        %v236 = vpop.trf.xlu0
        %v237 = vpop.trf.xlu0
        %v238 = vpop.trf.xlu0
        %v239 = vpop.trf.xlu0
        %v240 = vpop.trf.xlu0
        %v241 = vpop.trf.xlu0
        %v242 = vpop.trf.xlu0
        %v243 = vpop.trf.xlu0
        %v244 = vpop.trf.xlu0
        %v245 = vpop.trf.xlu0
        %v246 = vpop.trf.xlu0
        %v247 = vpop.trf.xlu0
        %v248 = vpop.trf.xlu0
        %v249 = vpop.trf.xlu0
        %v250 = vpop.trf.xlu0
        %v251 = vpop.trf.xlu0
        %v253 = vsel %vm190, %v236, 0
        %v256 = vsel %vm190, %v237, 0
        %258 = vmatpush.msra.mxu0 0.0
        %259 = vmatpush.msra.mxu0 0.0
        %260 = vmatpush.msra.mxu0 0.0
        %261 = vmatpush.msra.mxu0 0.0
        %262 = vmatpush.msra.mxu0 0.0
        %263 = vmatpush.msra.mxu0 0.0
        %264 = vmatpush.msra.mxu0 0.0
        %265 = vmatpush.msra.mxu0 0.0
        %266 = vmatpush.msra.mxu0 0.0
        %267 = vmatpush.msra.mxu0 0.0
        %268 = vmatpush.msra.mxu0 0.0
        %269 = vmatpush.msra.mxu0 0.0
        %270 = vmatpush.msra.mxu0 0.0
        %271 = vmatpush.msra.mxu0 0.0
        %272 = vmatpush.msra.mxu0 0.0
        %273 = vmatpush.msra.mxu0 %v142
        %274 = vmatmul.f32.gmra.mxu0 %v253
        %v275 = vpop.f32.mrf.mxu0
        %v276 = vadd.f32 0.0, %v275
        %277 = vmatmul.f32.gmra.mxu0 %v256
        %v278 = vpop.f32.mrf.mxu0
        %v279 = vadd.f32 0.0, %v278
        %280 = vdwg.mxu0
        %281 = vxpose.xlu0.b32.start [1/16] %v156, 128
        %282 = vxpose.xlu0.b32.cont [2/16] 0.0, 128
        %283 = vxpose.xlu0.b32.cont [3/16] 0.0, 128
        %284 = vxpose.xlu0.b32.cont [4/16] 0.0, 128
        %285 = vxpose.xlu0.b32.cont [5/16] 0.0, 128
        %286 = vxpose.xlu0.b32.cont [6/16] 0.0, 128
        %287 = vxpose.xlu0.b32.cont [7/16] 0.0, 128
        %288 = vxpose.xlu0.b32.cont [8/16] 0.0, 128
        %289 = vxpose.xlu0.b32.cont [9/16] 0.0, 128
        %290 = vxpose.xlu0.b32.cont [10/16] 0.0, 128
        %291 = vxpose.xlu0.b32.cont [11/16] 0.0, 128
        %292 = vxpose.xlu0.b32.cont [12/16] 0.0, 128
        %293 = vxpose.xlu0.b32.cont [13/16] 0.0, 128
        %294 = vxpose.xlu0.b32.cont [14/16] 0.0, 128
        %295 = vxpose.xlu0.b32.cont [15/16] 0.0, 128
        %296 = vxpose.xlu0.b32.end [16/16] 0.0, 128
        %v297 = vpop.trf.xlu0
        %v298 = vpop.trf.xlu0
        %v299 = vpop.trf.xlu0
        %v300 = vpop.trf.xlu0
        %v301 = vpop.trf.xlu0
        %v302 = vpop.trf.xlu0
        %v303 = vpop.trf.xlu0
        %v304 = vpop.trf.xlu0
        %v305 = vpop.trf.xlu0
        %v306 = vpop.trf.xlu0
        %v307 = vpop.trf.xlu0
        %v308 = vpop.trf.xlu0
        %v309 = vpop.trf.xlu0
        %v310 = vpop.trf.xlu0
        %v311 = vpop.trf.xlu0
        %v312 = vpop.trf.xlu0
        %v314 = vsel %vm190, %v297, 0
        %v317 = vsel %vm190, %v298, 0
        %319 = vmatpush.msra.mxu0 0.0
        %320 = vmatpush.msra.mxu0 0.0
        %321 = vmatpush.msra.mxu0 0.0
        %322 = vmatpush.msra.mxu0 0.0
        %323 = vmatpush.msra.mxu0 0.0
        %324 = vmatpush.msra.mxu0 0.0
        %325 = vmatpush.msra.mxu0 0.0
        %326 = vmatpush.msra.mxu0 0.0
        %327 = vmatpush.msra.mxu0 0.0
        %328 = vmatpush.msra.mxu0 0.0
        %329 = vmatpush.msra.mxu0 0.0
        %330 = vmatpush.msra.mxu0 0.0
        %331 = vmatpush.msra.mxu0 0.0
        %332 = vmatpush.msra.mxu0 0.0
        %333 = vmatpush.msra.mxu0 0.0
        %334 = vmatpush.msra.mxu0 %v143
        %335 = vmatmul.f32.gmra.mxu0 %v314
        %v336 = vpop.f32.mrf.mxu0
        %v337 = vadd.f32 0.0, %v336
        %338 = vmatmul.f32.gmra.mxu0 %v317
        %v339 = vpop.f32.mrf.mxu0
        %v340 = vadd.f32 0.0, %v339
        %341 = vdwg.mxu0
        %342 = vxpose.xlu0.b32.start [1/16] %v157, 128
        %343 = vxpose.xlu0.b32.cont [2/16] 0.0, 128
        %344 = vxpose.xlu0.b32.cont [3/16] 0.0, 128
        %345 = vxpose.xlu0.b32.cont [4/16] 0.0, 128
        %346 = vxpose.xlu0.b32.cont [5/16] 0.0, 128
        %347 = vxpose.xlu0.b32.cont [6/16] 0.0, 128
        %348 = vxpose.xlu0.b32.cont [7/16] 0.0, 128
        %349 = vxpose.xlu0.b32.cont [8/16] 0.0, 128
        %350 = vxpose.xlu0.b32.cont [9/16] 0.0, 128
        %351 = vxpose.xlu0.b32.cont [10/16] 0.0, 128
        %352 = vxpose.xlu0.b32.cont [11/16] 0.0, 128
        %353 = vxpose.xlu0.b32.cont [12/16] 0.0, 128
        %354 = vxpose.xlu0.b32.cont [13/16] 0.0, 128
        %355 = vxpose.xlu0.b32.cont [14/16] 0.0, 128
        %356 = vxpose.xlu0.b32.cont [15/16] 0.0, 128
        %357 = vxpose.xlu0.b32.end [16/16] 0.0, 128
        %v358 = vpop.trf.xlu0
        %v359 = vpop.trf.xlu0
        %v360 = vpop.trf.xlu0
        %v361 = vpop.trf.xlu0
        %v362 = vpop.trf.xlu0
        %v363 = vpop.trf.xlu0
        %v364 = vpop.trf.xlu0
        %v365 = vpop.trf.xlu0
        %v366 = vpop.trf.xlu0
        %v367 = vpop.trf.xlu0
        %v368 = vpop.trf.xlu0
        %v369 = vpop.trf.xlu0
        %v370 = vpop.trf.xlu0
        %v371 = vpop.trf.xlu0
        %v372 = vpop.trf.xlu0
        %v373 = vpop.trf.xlu0
        %v375 = vsel %vm190, %v358, 0
        %v378 = vsel %vm190, %v359, 0
        %380 = vmatpush.msra.mxu0 0.0
        %381 = vmatpush.msra.mxu0 0.0
        %382 = vmatpush.msra.mxu0 0.0
        %383 = vmatpush.msra.mxu0 0.0
        %384 = vmatpush.msra.mxu0 0.0
        %385 = vmatpush.msra.mxu0 0.0
        %386 = vmatpush.msra.mxu0 0.0
        %387 = vmatpush.msra.mxu0 0.0
        %388 = vmatpush.msra.mxu0 0.0
        %389 = vmatpush.msra.mxu0 0.0
        %390 = vmatpush.msra.mxu0 0.0
        %391 = vmatpush.msra.mxu0 0.0
        %392 = vmatpush.msra.mxu0 0.0
        %393 = vmatpush.msra.mxu0 0.0
        %394 = vmatpush.msra.mxu0 0.0
        %395 = vmatpush.msra.mxu0 %v144
        %396 = vmatmul.f32.gmra.mxu0 %v375
        %v397 = vpop.f32.mrf.mxu0
        %v398 = vadd.f32 0.0, %v397
        %399 = vmatmul.f32.gmra.mxu0 %v378
        %v400 = vpop.f32.mrf.mxu0
        %v401 = vadd.f32 0.0, %v400
        %402 = vdwg.mxu0
        %vm403 = vcmask 130048
        %v404 = vsel %vm403, %v215, -inf
        %405 = vmax.xlane.f32.xlu0 %v404
        %v406 = vpop.xlane.xlu0 %405
        %v407 = vsel %vm403, %v218, -inf
        %408 = vmax.xlane.f32.xlu0 %v407
        %v409 = vpop.xlane.xlu0 %408
        %v410 = vsel %vm403, %v276, -inf
        %411 = vmax.xlane.f32.xlu0 %v410
        %v412 = vpop.xlane.xlu0 %411
        %v413 = vsel %vm403, %v279, -inf
        %414 = vmax.xlane.f32.xlu0 %v413
        %v415 = vpop.xlane.xlu0 %414
        %v416 = vsel %vm403, %v337, -inf
        %417 = vmax.xlane.f32.xlu0 %v416
        %v418 = vpop.xlane.xlu0 %417
        %v419 = vsel %vm403, %v340, -inf
        %420 = vmax.xlane.f32.xlu0 %v419
        %v421 = vpop.xlane.xlu0 %420
        %v422 = vsel %vm403, %v398, -inf
        %423 = vmax.xlane.f32.xlu0 %v422
        %v424 = vpop.xlane.xlu0 %423
        %v425 = vsel %vm403, %v401, -inf
        %426 = vmax.xlane.f32.xlu0 %v425
        %v427 = vpop.xlane.xlu0 %426
        %v428 = vsub.f32 %v215, %v406
        %v429 = vsub.f32 %v218, %v409
        %v430 = vsub.f32 %v276, %v412
        %v431 = vsub.f32 %v279, %v415
        %v432 = vsub.f32 %v337, %v418
        %v433 = vsub.f32 %v340, %v421
        %v434 = vsub.f32 %v398, %v424
        %v435 = vsub.f32 %v401, %v427
        %v436 = vmul.f32 %v428, 1.442695
        %v437 = vpow.pop %v436
        %v438 = vmul.f32 %v429, 1.442695
        %v439 = vpow.pop %v438
        %v440 = vmul.f32 %v430, 1.442695
        %v441 = vpow.pop %v440
        %v442 = vmul.f32 %v431, 1.442695
        %v443 = vpow.pop %v442
        %v444 = vmul.f32 %v432, 1.442695
        %v445 = vpow.pop %v444
        %v446 = vmul.f32 %v433, 1.442695
        %v447 = vpow.pop %v446
        %v448 = vmul.f32 %v434, 1.442695
        %v449 = vpow.pop %v448
        %v450 = vmul.f32 %v435, 1.442695
        %v451 = vpow.pop %v450
        %v452 = vsel %vm403, %v437, 0.0
        %453 = vadd.xlane.f32.xlu0 %v452
        %v454 = vpop.xlane.xlu0 %453
        %v455 = vsel %vm403, %v439, 0.0
        %456 = vadd.xlane.f32.xlu0 %v455
        %v457 = vpop.xlane.xlu0 %456
        %v458 = vsel %vm403, %v441, 0.0
        %459 = vadd.xlane.f32.xlu0 %v458
        %v460 = vpop.xlane.xlu0 %459
        %v461 = vsel %vm403, %v443, 0.0
        %462 = vadd.xlane.f32.xlu0 %v461
        %v463 = vpop.xlane.xlu0 %462
        %v464 = vsel %vm403, %v445, 0.0
        %465 = vadd.xlane.f32.xlu0 %v464
        %v466 = vpop.xlane.xlu0 %465
        %v467 = vsel %vm403, %v447, 0.0
        %468 = vadd.xlane.f32.xlu0 %v467
        %v469 = vpop.xlane.xlu0 %468
        %v470 = vsel %vm403, %v449, 0.0
        %471 = vadd.xlane.f32.xlu0 %v470
        %v472 = vpop.xlane.xlu0 %471
        %v473 = vsel %vm403, %v451, 0.0
        %474 = vadd.xlane.f32.xlu0 %v473
        %v475 = vpop.xlane.xlu0 %474
        %v477 = vsel %vm403, %v437, 0
        %v480 = vsel %vm403, %v439, 0
        %v483 = vsel %vm403, %v146, 0
        %485 = vmatpush.xpose.msra.mxu0 0.0
        %486 = vmatpush.xpose.msra.mxu0 0.0
        %487 = vmatpush.xpose.msra.mxu0 0.0
        %488 = vmatpush.xpose.msra.mxu0 0.0
        %489 = vmatpush.xpose.msra.mxu0 0.0
        %490 = vmatpush.xpose.msra.mxu0 0.0
        %491 = vmatpush.xpose.msra.mxu0 0.0
        %492 = vmatpush.xpose.msra.mxu0 0.0
        %493 = vmatpush.xpose.msra.mxu0 0.0
        %494 = vmatpush.xpose.msra.mxu0 0.0
        %495 = vmatpush.xpose.msra.mxu0 0.0
        %496 = vmatpush.xpose.msra.mxu0 0.0
        %497 = vmatpush.xpose.msra.mxu0 0.0
        %498 = vmatpush.xpose.msra.mxu0 0.0
        %499 = vmatpush.xpose.msra.mxu0 0.0
        %500 = vmatpush.xpose.msra.mxu0 %v483
        %501 = vmatmul.f32.gmra.mxu0 %v477
        %v502 = vpop.f32.mrf.mxu0
        %v503 = vadd.f32 0.0, %v502
        %504 = vmatmul.f32.gmra.mxu0 %v480
        %v505 = vpop.f32.mrf.mxu0
        %v506 = vadd.f32 0.0, %v505
        %507 = vdwg.mxu0
        %v509 = vsel %vm403, %v441, 0
        %v512 = vsel %vm403, %v443, 0
        %v515 = vsel %vm403, %v147, 0
        %517 = vmatpush.xpose.msra.mxu0 0.0
        %518 = vmatpush.xpose.msra.mxu0 0.0
        %519 = vmatpush.xpose.msra.mxu0 0.0
        %520 = vmatpush.xpose.msra.mxu0 0.0
        %521 = vmatpush.xpose.msra.mxu0 0.0
        %522 = vmatpush.xpose.msra.mxu0 0.0
        %523 = vmatpush.xpose.msra.mxu0 0.0
        %524 = vmatpush.xpose.msra.mxu0 0.0
        %525 = vmatpush.xpose.msra.mxu0 0.0
        %526 = vmatpush.xpose.msra.mxu0 0.0
        %527 = vmatpush.xpose.msra.mxu0 0.0
        %528 = vmatpush.xpose.msra.mxu0 0.0
        %529 = vmatpush.xpose.msra.mxu0 0.0
        %530 = vmatpush.xpose.msra.mxu0 0.0
        %531 = vmatpush.xpose.msra.mxu0 0.0
        %532 = vmatpush.xpose.msra.mxu0 %v515
        %533 = vmatmul.f32.gmra.mxu0 %v509
        %v534 = vpop.f32.mrf.mxu0
        %v535 = vadd.f32 0.0, %v534
        %536 = vmatmul.f32.gmra.mxu0 %v512
        %v537 = vpop.f32.mrf.mxu0
        %v538 = vadd.f32 0.0, %v537
        %539 = vdwg.mxu0
        %v541 = vsel %vm403, %v445, 0
        %v544 = vsel %vm403, %v447, 0
        %v547 = vsel %vm403, %v148, 0
        %549 = vmatpush.xpose.msra.mxu0 0.0
        %550 = vmatpush.xpose.msra.mxu0 0.0
        %551 = vmatpush.xpose.msra.mxu0 0.0
        %552 = vmatpush.xpose.msra.mxu0 0.0
        %553 = vmatpush.xpose.msra.mxu0 0.0
        %554 = vmatpush.xpose.msra.mxu0 0.0
        %555 = vmatpush.xpose.msra.mxu0 0.0
        %556 = vmatpush.xpose.msra.mxu0 0.0
        %557 = vmatpush.xpose.msra.mxu0 0.0
        %558 = vmatpush.xpose.msra.mxu0 0.0
        %559 = vmatpush.xpose.msra.mxu0 0.0
        %560 = vmatpush.xpose.msra.mxu0 0.0
        %561 = vmatpush.xpose.msra.mxu0 0.0
        %562 = vmatpush.xpose.msra.mxu0 0.0
        %563 = vmatpush.xpose.msra.mxu0 0.0
        %564 = vmatpush.xpose.msra.mxu0 %v547
        %565 = vmatmul.f32.gmra.mxu0 %v541
        %v566 = vpop.f32.mrf.mxu0
        %v567 = vadd.f32 0.0, %v566
        %568 = vmatmul.f32.gmra.mxu0 %v544
        %v569 = vpop.f32.mrf.mxu0
        %v570 = vadd.f32 0.0, %v569
        %571 = vdwg.mxu0
        %v573 = vsel %vm403, %v449, 0
        %v576 = vsel %vm403, %v451, 0
        %v579 = vsel %vm403, %v149, 0
        %581 = vmatpush.xpose.msra.mxu0 0.0
        %582 = vmatpush.xpose.msra.mxu0 0.0
        %583 = vmatpush.xpose.msra.mxu0 0.0
        %584 = vmatpush.xpose.msra.mxu0 0.0
        %585 = vmatpush.xpose.msra.mxu0 0.0
        %586 = vmatpush.xpose.msra.mxu0 0.0
        %587 = vmatpush.xpose.msra.mxu0 0.0
        %588 = vmatpush.xpose.msra.mxu0 0.0
        %589 = vmatpush.xpose.msra.mxu0 0.0
        %590 = vmatpush.xpose.msra.mxu0 0.0
        %591 = vmatpush.xpose.msra.mxu0 0.0
        %592 = vmatpush.xpose.msra.mxu0 0.0
        %593 = vmatpush.xpose.msra.mxu0 0.0
        %594 = vmatpush.xpose.msra.mxu0 0.0
        %595 = vmatpush.xpose.msra.mxu0 0.0
        %596 = vmatpush.xpose.msra.mxu0 %v579
        %597 = vmatmul.f32.gmra.mxu0 %v573
        %v598 = vpop.f32.mrf.mxu0
        %v599 = vadd.f32 0.0, %v598
        %600 = vmatmul.f32.gmra.mxu0 %v576
        %v601 = vpop.f32.mrf.mxu0
        %v602 = vadd.f32 0.0, %v601
        %603 = vdwg.mxu0
        %v604 = vrcp.pop %v454
        %v605 = vmul.f32 %v454, %v604
        %v606 = vsub.f32 1.0, %v605
        %v607 = vmul.f32 %v604, %v606
        %v608 = vadd.f32 %v604, %v607
        %vm609 = vweird.f32 %v454
        %vm610 = vweird.f32 %v604
        %vm611 = vmor %vm609, %vm610
        %v612 = vsel %vm611, %v604, %v608
        %v613 = vand.u32 2147483647, %v454
        %vm614 = vcmp.eq.f32.partialorder %v613, 8.507059e+37
        %v615 = vand.u32 %v454, 2147483648
        %v616 = vor.u32 1.1754944e-38, %v615
        %v617 = vsel %vm614, %v616, %v612
        %v618 = vrcp.pop %v457
        %v619 = vmul.f32 %v457, %v618
        %v620 = vsub.f32 1.0, %v619
        %v621 = vmul.f32 %v618, %v620
        %v622 = vadd.f32 %v618, %v621
        %vm623 = vweird.f32 %v457
        %vm624 = vweird.f32 %v618
        %vm625 = vmor %vm623, %vm624
        %v626 = vsel %vm625, %v618, %v622
        %v627 = vand.u32 2147483647, %v457
        %vm628 = vcmp.eq.f32.partialorder %v627, 8.507059e+37
        %v629 = vand.u32 %v457, 2147483648
        %v630 = vor.u32 1.1754944e-38, %v629
        %v631 = vsel %vm628, %v630, %v626
        %v632 = vrcp.pop %v460
        %v633 = vmul.f32 %v460, %v632
        %v634 = vsub.f32 1.0, %v633
        %v635 = vmul.f32 %v632, %v634
        %v636 = vadd.f32 %v632, %v635
        %vm637 = vweird.f32 %v460
        %vm638 = vweird.f32 %v632
        %vm639 = vmor %vm637, %vm638
        %v640 = vsel %vm639, %v632, %v636
        %v641 = vand.u32 2147483647, %v460
        %vm642 = vcmp.eq.f32.partialorder %v641, 8.507059e+37
        %v643 = vand.u32 %v460, 2147483648
        %v644 = vor.u32 1.1754944e-38, %v643
        %v645 = vsel %vm642, %v644, %v640
        %v646 = vrcp.pop %v463
        %v647 = vmul.f32 %v463, %v646
        %v648 = vsub.f32 1.0, %v647
        %v649 = vmul.f32 %v646, %v648
        %v650 = vadd.f32 %v646, %v649
        %vm651 = vweird.f32 %v463
        %vm652 = vweird.f32 %v646
        %vm653 = vmor %vm651, %vm652
        %v654 = vsel %vm653, %v646, %v650
        %v655 = vand.u32 2147483647, %v463
        %vm656 = vcmp.eq.f32.partialorder %v655, 8.507059e+37
        %v657 = vand.u32 %v463, 2147483648
        %v658 = vor.u32 1.1754944e-38, %v657
        %v659 = vsel %vm656, %v658, %v654
        %v660 = vrcp.pop %v466
        %v661 = vmul.f32 %v466, %v660
        %v662 = vsub.f32 1.0, %v661
        %v663 = vmul.f32 %v660, %v662
        %v664 = vadd.f32 %v660, %v663
        %vm665 = vweird.f32 %v466
        %vm666 = vweird.f32 %v660
        %vm667 = vmor %vm665, %vm666
        %v668 = vsel %vm667, %v660, %v664
        %v669 = vand.u32 2147483647, %v466
        %vm670 = vcmp.eq.f32.partialorder %v669, 8.507059e+37
        %v671 = vand.u32 %v466, 2147483648
        %v672 = vor.u32 1.1754944e-38, %v671
        %v673 = vsel %vm670, %v672, %v668
        %v674 = vrcp.pop %v469
        %v675 = vmul.f32 %v469, %v674
        %v676 = vsub.f32 1.0, %v675
        %v677 = vmul.f32 %v674, %v676
        %v678 = vadd.f32 %v674, %v677
        %vm679 = vweird.f32 %v469
        %vm680 = vweird.f32 %v674
        %vm681 = vmor %vm679, %vm680
        %v682 = vsel %vm681, %v674, %v678
        %v683 = vand.u32 2147483647, %v469
        %vm684 = vcmp.eq.f32.partialorder %v683, 8.507059e+37
        %v685 = vand.u32 %v469, 2147483648
        %v686 = vor.u32 1.1754944e-38, %v685
        %v687 = vsel %vm684, %v686, %v682
        %v688 = vrcp.pop %v472
        %v689 = vmul.f32 %v472, %v688
        %v690 = vsub.f32 1.0, %v689
        %v691 = vmul.f32 %v688, %v690
        %v692 = vadd.f32 %v688, %v691
        %vm693 = vweird.f32 %v472
        %vm694 = vweird.f32 %v688
        %vm695 = vmor %vm693, %vm694
        %v696 = vsel %vm695, %v688, %v692
        %v697 = vand.u32 2147483647, %v472
        %vm698 = vcmp.eq.f32.partialorder %v697, 8.507059e+37
        %v699 = vand.u32 %v472, 2147483648
        %v700 = vor.u32 1.1754944e-38, %v699
        %v701 = vsel %vm698, %v700, %v696
        %v702 = vrcp.pop %v475
        %v703 = vmul.f32 %v475, %v702
        %v704 = vsub.f32 1.0, %v703
        %v705 = vmul.f32 %v702, %v704
        %v706 = vadd.f32 %v702, %v705
        %vm707 = vweird.f32 %v475
        %vm708 = vweird.f32 %v702
        %vm709 = vmor %vm707, %vm708
        %v710 = vsel %vm709, %v702, %v706
        %v711 = vand.u32 2147483647, %v475
        %vm712 = vcmp.eq.f32.partialorder %v711, 8.507059e+37
        %v713 = vand.u32 %v475, 2147483648
        %v714 = vor.u32 1.1754944e-38, %v713
        %v715 = vsel %vm712, %v714, %v710
        %v716 = vmul.f32 %v503, %v617
        %v717 = vmul.f32 %v506, %v631
        %v718 = vmul.f32 %v535, %v645
        %v719 = vmul.f32 %v538, %v659
        %v720 = vmul.f32 %v567, %v673
        %v721 = vmul.f32 %v570, %v687
        %v722 = vmul.f32 %v599, %v701
        %v723 = vmul.f32 %v602, %v715
        %724 = vxpose.xlu0.b32.start [1/16] %v716, 128
        %725 = vxpose.xlu0.b32.cont [2/16] %v717, 128
        %726 = vxpose.xlu0.b32.cont [3/16] 0.0, 128
        %727 = vxpose.xlu0.b32.cont [4/16] 0.0, 128
        %728 = vxpose.xlu0.b32.cont [5/16] 0.0, 128
        %729 = vxpose.xlu0.b32.cont [6/16] 0.0, 128
        %730 = vxpose.xlu0.b32.cont [7/16] 0.0, 128
        %731 = vxpose.xlu0.b32.cont [8/16] 0.0, 128
        %732 = vxpose.xlu0.b32.cont [9/16] 0.0, 128
        %733 = vxpose.xlu0.b32.cont [10/16] 0.0, 128
        %734 = vxpose.xlu0.b32.cont [11/16] 0.0, 128
        %735 = vxpose.xlu0.b32.cont [12/16] 0.0, 128
        %736 = vxpose.xlu0.b32.cont [13/16] 0.0, 128
        %737 = vxpose.xlu0.b32.cont [14/16] 0.0, 128
        %738 = vxpose.xlu0.b32.cont [15/16] 0.0, 128
        %739 = vxpose.xlu0.b32.end [16/16] 0.0, 128
        %v740 = vpop.trf.xlu0
        %v741 = vpop.trf.xlu0
        %v742 = vpop.trf.xlu0
        %v743 = vpop.trf.xlu0
        %v744 = vpop.trf.xlu0
        %v745 = vpop.trf.xlu0
        %v746 = vpop.trf.xlu0
        %v747 = vpop.trf.xlu0
        %v748 = vpop.trf.xlu0
        %v749 = vpop.trf.xlu0
        %v750 = vpop.trf.xlu0
        %v751 = vpop.trf.xlu0
        %v752 = vpop.trf.xlu0
        %v753 = vpop.trf.xlu0
        %v754 = vpop.trf.xlu0
        %v755 = vpop.trf.xlu0
        %756 = vxpose.xlu0.b32.start [1/16] %v718, 128
        %757 = vxpose.xlu0.b32.cont [2/16] %v719, 128
        %758 = vxpose.xlu0.b32.cont [3/16] 0.0, 128
        %759 = vxpose.xlu0.b32.cont [4/16] 0.0, 128
        %760 = vxpose.xlu0.b32.cont [5/16] 0.0, 128
        %761 = vxpose.xlu0.b32.cont [6/16] 0.0, 128
        %762 = vxpose.xlu0.b32.cont [7/16] 0.0, 128
        %763 = vxpose.xlu0.b32.cont [8/16] 0.0, 128
        %764 = vxpose.xlu0.b32.cont [9/16] 0.0, 128
        %765 = vxpose.xlu0.b32.cont [10/16] 0.0, 128
        %766 = vxpose.xlu0.b32.cont [11/16] 0.0, 128
        %767 = vxpose.xlu0.b32.cont [12/16] 0.0, 128
        %768 = vxpose.xlu0.b32.cont [13/16] 0.0, 128
        %769 = vxpose.xlu0.b32.cont [14/16] 0.0, 128
        %770 = vxpose.xlu0.b32.cont [15/16] 0.0, 128
        %771 = vxpose.xlu0.b32.end [16/16] 0.0, 128
        %v772 = vpop.trf.xlu0
        %v773 = vpop.trf.xlu0
        %v774 = vpop.trf.xlu0
        %v775 = vpop.trf.xlu0
        %v776 = vpop.trf.xlu0
        %v777 = vpop.trf.xlu0
        %v778 = vpop.trf.xlu0
        %v779 = vpop.trf.xlu0
        %v780 = vpop.trf.xlu0
        %v781 = vpop.trf.xlu0
        %v782 = vpop.trf.xlu0
        %v783 = vpop.trf.xlu0
        %v784 = vpop.trf.xlu0
        %v785 = vpop.trf.xlu0
        %v786 = vpop.trf.xlu0
        %v787 = vpop.trf.xlu0
        %788 = vxpose.xlu0.b32.start [1/16] %v720, 128
        %789 = vxpose.xlu0.b32.cont [2/16] %v721, 128
        %790 = vxpose.xlu0.b32.cont [3/16] 0.0, 128
        %791 = vxpose.xlu0.b32.cont [4/16] 0.0, 128
        %792 = vxpose.xlu0.b32.cont [5/16] 0.0, 128
        %793 = vxpose.xlu0.b32.cont [6/16] 0.0, 128
        %794 = vxpose.xlu0.b32.cont [7/16] 0.0, 128
        %795 = vxpose.xlu0.b32.cont [8/16] 0.0, 128
        %796 = vxpose.xlu0.b32.cont [9/16] 0.0, 128
        %797 = vxpose.xlu0.b32.cont [10/16] 0.0, 128
        %798 = vxpose.xlu0.b32.cont [11/16] 0.0, 128
        %799 = vxpose.xlu0.b32.cont [12/16] 0.0, 128
        %800 = vxpose.xlu0.b32.cont [13/16] 0.0, 128
        %801 = vxpose.xlu0.b32.cont [14/16] 0.0, 128
        %802 = vxpose.xlu0.b32.cont [15/16] 0.0, 128
        %803 = vxpose.xlu0.b32.end [16/16] 0.0, 128
        %v804 = vpop.trf.xlu0
        %v805 = vpop.trf.xlu0
        %v806 = vpop.trf.xlu0
        %v807 = vpop.trf.xlu0
        %v808 = vpop.trf.xlu0
        %v809 = vpop.trf.xlu0
        %v810 = vpop.trf.xlu0
        %v811 = vpop.trf.xlu0
        %v812 = vpop.trf.xlu0
        %v813 = vpop.trf.xlu0
        %v814 = vpop.trf.xlu0
        %v815 = vpop.trf.xlu0
        %v816 = vpop.trf.xlu0
        %v817 = vpop.trf.xlu0
        %v818 = vpop.trf.xlu0
        %v819 = vpop.trf.xlu0
        %820 = vxpose.xlu0.b32.start [1/16] %v722, 128
        %821 = vxpose.xlu0.b32.cont [2/16] %v723, 128
        %822 = vxpose.xlu0.b32.cont [3/16] 0.0, 128
        %823 = vxpose.xlu0.b32.cont [4/16] 0.0, 128
        %824 = vxpose.xlu0.b32.cont [5/16] 0.0, 128
        %825 = vxpose.xlu0.b32.cont [6/16] 0.0, 128
        %826 = vxpose.xlu0.b32.cont [7/16] 0.0, 128
        %827 = vxpose.xlu0.b32.cont [8/16] 0.0, 128
        %828 = vxpose.xlu0.b32.cont [9/16] 0.0, 128
        %829 = vxpose.xlu0.b32.cont [10/16] 0.0, 128
        %830 = vxpose.xlu0.b32.cont [11/16] 0.0, 128
        %831 = vxpose.xlu0.b32.cont [12/16] 0.0, 128
        %832 = vxpose.xlu0.b32.cont [13/16] 0.0, 128
        %833 = vxpose.xlu0.b32.cont [14/16] 0.0, 128
        %834 = vxpose.xlu0.b32.cont [15/16] 0.0, 128
        %835 = vxpose.xlu0.b32.end [16/16] 0.0, 128
        %v836 = vpop.trf.xlu0
        %v837 = vpop.trf.xlu0
        %v838 = vpop.trf.xlu0
        %v839 = vpop.trf.xlu0
        %v840 = vpop.trf.xlu0
        %v841 = vpop.trf.xlu0
        %v842 = vpop.trf.xlu0
        %v843 = vpop.trf.xlu0
        %v844 = vpop.trf.xlu0
        %v845 = vpop.trf.xlu0
        %v846 = vpop.trf.xlu0
        %v847 = vpop.trf.xlu0
        %v848 = vpop.trf.xlu0
        %v849 = vpop.trf.xlu0
        %v850 = vpop.trf.xlu0
        %v851 = vpop.trf.xlu0
        %852 = vst.msk [vmem:[%s137] sm:$0xff] %vm403, %v740
        %853 = vst.msk [vmem:[%s137 + $0x8] sm:$0xff] %vm403, %v772
        %854 = vst.msk [vmem:[%s137 + $0x10] sm:$0xff] %vm403, %v804
        %855 = vst.msk [vmem:[%s137 + $0x18] sm:$0xff] %vm403, %v836
        %s856 = sand.u32 %s52, 1
        %s857 = scalar_lea.sflag [#allocation4], %s856
        %s858 = sand.u32 %s52, 1
        %s859 = smul.addr %s858, 32
        %s860 = scalar_lea.vmem [#allocation5], %s859
        // Predicated region
        $region29: #{tpu_custom_call.1} parent=23 // pred_check
          %p861 = pneg %p62
        $region30: #{tpu_custom_call.1} parent=23 // pred_check_branch
          %863 = sbr.rel (%p861) target = $region32
        $region31: #{tpu_custom_call.1} parent=23 // pred_region
          %s864 = smul.u32 4, %s18
          %866 = vsyncadd %s857, 0
          %s867 = smul.addr %s864, 8
          %s868 = scalar_lea.hbm %s1, %s867
          %s869 = sshll.u32 %s860, 4
          %s870 = int_to_ptr.vmem [resolvable:$true] %s869
          %s871 = sshll.u32 %s868, 4
          %s872 = int_to_ptr.hbm [resolvable:$true] %s871
          %877 = dma.vmem_to_hbm [thread:$0]  %s870, 512, %s872, %s857, 128, 128, 8
        $region32: #{tpu_custom_call.1} parent=23 // pred_fallthru
          _
      $region24: #{tpu_custom_call.1} parent=5 // pred_fallthru
        _
      %p878 = scmp.le.s32.totalorder 2, %s13
      // Predicated region
      $region33: #{tpu_custom_call.1} parent=5 // pred_check
        %p879 = pneg %p878
      $region34: #{tpu_custom_call.1} parent=5 // pred_check_branch
        %881 = sbr.rel (%p879) target = $region36
      $region35: #{tpu_custom_call.1} parent=5 // pred_region
        %s882 = ssub.s32 %s13, 2
        // Predicated region
        $region37: #{tpu_custom_call.1} parent=35 // pred_check
          %p883 = pneg %p68
        $region38: #{tpu_custom_call.1} parent=35 // pred_check_branch
          %885 = sbr.rel (%p883) target = $region40
        $region39: #{tpu_custom_call.1} parent=35 // pred_region
          %s886 = sand.u32 %s53, 1
          %s887 = scalar_lea.sflag [#allocation4], %s886
          %s888 = sand.u32 %s53, 1
          %s889 = smul.addr %s888, 32
          %s890 = scalar_lea.vmem [#allocation5], %s889
          %892 = dma.done %s887, 512
        $region40: #{tpu_custom_call.1} parent=35 // pred_fallthru
          _
      $region36: #{tpu_custom_call.1} parent=5 // pred_fallthru
        _
    $region6: #{tpu_custom_call.1} parent=1 // loop_footer
      %s17 = sadd.s32 1, %s13
    $region7: #{tpu_custom_call.1} parent=1 // loop_footer_branch
      %12 = sbr.rel target = $region3
    $region8: #{tpu_custom_call.1} parent=1 // loop_exit
      _
    %893 = vsyncpa [#allocation3], 1
    %s894 = scalar_lea.sflag [#allocation3], 1
    %895 = vsyncpa %s894, 1
    %896 = vsyncpa [#allocation4], 1
    %s897 = scalar_lea.sflag [#allocation4], 1
    %898 = vsyncpa %s897, 1

</llo_original>
